<compile_context>
chip_gen: v7x
topology: tpu7x:2x2x1
jax: 0.10.0
libtpu: 0.0.40
codegen_flags: <defaults>
</compile_context>

<pallas_src>
import math

import jax
import jax.numpy as jnp
from jax.experimental import pallas as pl
from jax.experimental.pallas import tpu as pltpu

STATE_DIM = 16
ACTION_DIM = 3
SA_DIM = STATE_DIM + ACTION_DIM
H1, H2, H3 = 400, 300, 200
EPS = 1e-5
NEG_SLOPE = 0.01

_MAX_FUSED_B = 1024     # whole batch comfortably fits VMEM below this
_TB_MAX = 512           # rows per batch tile in the two-pass path
_VMEM_LIMIT = 16 << 20  # actual footprint is a few MiB; leave pipelining headroom


def _leaky_relu(x):
    # one mul + one max (vs compare + select + mul with jnp.where)
    return jnp.maximum(x, NEG_SLOPE * x)


def _fc12(sa_bf16, w1_bf16, b1, w2_bf16, b2):
    """leaky_relu(fc2(leaky_relu(fc1(sa)))) with bf16 MXU inputs, f32 accum."""
    h1 = jnp.dot(sa_bf16, w1_bf16, preferred_element_type=jnp.float32) + b1
    h1 = _leaky_relu(h1)
    h2 = jnp.dot(h1.astype(jnp.bfloat16), w2_bf16,
                 preferred_element_type=jnp.float32) + b2
    return _leaky_relu(h2)


def _bn_fc34(h2, scale, shift, w3_bf16, b3, w4_row, b4):
    """Folded BN (q*scale+shift), fc3 on the MXU, fc4 as a VPU row reduction."""
    hn = h2 * scale + shift
    h3 = jnp.dot(hn.astype(jnp.bfloat16), w3_bf16,
                 preferred_element_type=jnp.float32) + b3
    h3 = _leaky_relu(h3)
    return jnp.sum(h3 * w4_row, axis=-1, keepdims=True) + b4


# --------------------------------------------------------------------------
# Fused single-invocation kernel (small batches).
# --------------------------------------------------------------------------
def _fused_kernel(sa_ref, w1_ref, b1_ref, w2_ref, b2_ref,
                  gamma_ref, beta_ref, w3_ref, b3_ref, w4_ref, b4_ref,
                  out_ref):
    h2 = _fc12(sa_ref[...], w1_ref[...], b1_ref[...], w2_ref[...], b2_ref[...])
    inv_b = 1.0 / h2.shape[0]
    mean = jnp.sum(h2, axis=0, keepdims=True) * inv_b
    var = jnp.sum(h2 * h2, axis=0, keepdims=True) * inv_b - mean * mean
    scale = gamma_ref[...] * jax.lax.rsqrt(var + EPS)   # rsqrt -> EUP slot
    shift = beta_ref[...] - mean * scale
    out = _bn_fc34(h2, scale, shift, w3_ref[...], b3_ref[...],
                   w4_ref[...], b4_ref[...])
    out_ref[...] = out.astype(out_ref.dtype)


# --------------------------------------------------------------------------
# Batch-tiled two-pass kernels (large batches).
# --------------------------------------------------------------------------
def _make_stats_kernel(batch, tb, b_pad):
    """Pass 1: fc1+fc2 per tile, accumulate BN sum/sumsq, finalize scale/shift."""
    def kernel(sa_ref, w1_ref, b1_ref, w2_ref, b2_ref, gamma_ref, beta_ref,
               h2_ref, scale_ref, shift_ref, sum_ref, ssq_ref):
        i = pl.program_id(0)
        h2 = _fc12(sa_ref[...], w1_ref[...], b1_ref[...], w2_ref[...], b2_ref[...])
        h2_ref[...] = h2

        if b_pad != batch:   # static check: mask zero-padded tail rows from stats
            row = i * tb + jax.lax.broadcasted_iota(jnp.int32, (tb, 1), 0)
            h2 = jnp.where(row < batch, h2, 0.0)

        @pl.when(i == 0)
        def _():
            sum_ref[...] = jnp.zeros_like(sum_ref)
            ssq_ref[...] = jnp.zeros_like(ssq_ref)

        sum_ref[...] += jnp.sum(h2, axis=0, keepdims=True)
        ssq_ref[...] += jnp.sum(h2 * h2, axis=0, keepdims=True)

        @pl.when(i == pl.num_programs(0) - 1)
        def _():
            inv_b = 1.0 / batch
            mean = sum_ref[...] * inv_b
            var = ssq_ref[...] * inv_b - mean * mean
            sc = gamma_ref[...] * jax.lax.rsqrt(var + EPS)
            scale_ref[...] = sc
            shift_ref[...] = beta_ref[...] - mean * sc

    return kernel


def _norm_kernel(h2_ref, scale_ref, shift_ref, w3_ref, b3_ref, w4_ref, b4_ref,
                 out_ref):
    """Pass 2: folded BN + fc3 + fc4 per batch tile (rows independent)."""
    out = _bn_fc34(h2_ref[...], scale_ref[...], shift_ref[...],
                   w3_ref[...], b3_ref[...], w4_ref[...], b4_ref[...])
    out_ref[...] = out.astype(out_ref.dtype)


# --------------------------------------------------------------------------
# Wrappers
# --------------------------------------------------------------------------
def _full_spec(shape):
    nd = len(shape)
    return pl.BlockSpec(shape, lambda *_: (0,) * nd)


def _round_up(x, m):
    return ((x + m - 1) // m) * m


def _fused_forward(sa, w1b, b1, w2b, b2, gamma, beta, w3b, b3, w4r, b4r):
    batch = sa.shape[0]
    args = (sa, w1b, b1, w2b, b2, gamma, beta, w3b, b3, w4r, b4r)
    return pl.pallas_call(
        _fused_kernel,
        out_shape=jax.ShapeDtypeStruct((batch, 1), jnp.float32),
        grid=(),
        in_specs=[_full_spec(a.shape) for a in args],
        out_specs=_full_spec((batch, 1)),
        compiler_params=pltpu.CompilerParams(vmem_limit_bytes=_VMEM_LIMIT),
    )(*args)


def _tiled_forward(batch, sa, w1b, b1, w2b, b2, gamma, beta, w3b, b3, w4r, b4r):
    num_tiles = pl.cdiv(batch, _TB_MAX)
    tb = _round_up(pl.cdiv(batch, num_tiles), 8)   # sublane-aligned tile rows
    b_pad = num_tiles * tb
    if b_pad != batch:
        sa = jnp.pad(sa, ((0, b_pad - batch), (0, 0)))

    def row_spec(shape):
        return pl.BlockSpec(shape, lambda i: (i, 0))

    def rep_spec(shape):
        return pl.BlockSpec(shape, lambda i: (0, 0))

    # Pass 1: batch axis is a reduction for the BN statistics -> "arbitrary".
    h2, scale, shift = pl.pallas_call(
        _make_stats_kernel(batch, tb, b_pad),
        grid=(num_tiles,),
        in_specs=[
            row_spec((tb, SA_DIM)),
            rep_spec(w1b.shape), rep_spec(b1.shape),
            rep_spec(w2b.shape), rep_spec(b2.shape),
            rep_spec(gamma.shape), rep_spec(beta.shape),
        ],
        out_specs=[
            row_spec((tb, H2)),
            rep_spec((1, H2)),
            rep_spec((1, H2)),
        ],
        out_shape=[
            jax.ShapeDtypeStruct((b_pad, H2), jnp.float32),
            jax.ShapeDtypeStruct((1, H2), jnp.float32),
            jax.ShapeDtypeStruct((1, H2), jnp.float32),
        ],
        scratch_shapes=[
            pltpu.VMEM((1, H2), jnp.float32),   # running sum
            pltpu.VMEM((1, H2), jnp.float32),   # running sum of squares
        ],
        compiler_params=pltpu.CompilerParams(
            dimension_semantics=("arbitrary",),
            vmem_limit_bytes=_VMEM_LIMIT),
    )(sa, w1b, b1, w2b, b2, gamma, beta)

    # Pass 2: rows independent -> "parallel" (uses both TensorCores on v7x).
    out = pl.pallas_call(
        _norm_kernel,
        grid=(num_tiles,),
        in_specs=[
            row_spec((tb, H2)),
            rep_spec((1, H2)), rep_spec((1, H2)),
            rep_spec(w3b.shape), rep_spec(b3.shape),
            rep_spec(w4r.shape), rep_spec(b4r.shape),
        ],
        out_specs=row_spec((tb, 1)),
        out_shape=jax.ShapeDtypeStruct((b_pad, 1), jnp.float32),
        compiler_params=pltpu.CompilerParams(
            dimension_semantics=("parallel",),
            vmem_limit_bytes=_VMEM_LIMIT),
    )(h2, scale, shift, w3b, b3, w4r, b4r)

    return out[:batch]


def critic_forward(state, action, params):
    """Pallas forward. state: (B,16) f32, action: (B,3) f32 -> (B,1) f32."""
    w1, b1, w2, b2, gamma, beta, w3, b3, w4, b4 = params
    batch = state.shape[0]

    # fc1 fusion: one concat here instead of two small-K dots in the kernel.
    # Ship it in bf16 (MXU input precision) -> half the HBM->VMEM bytes and no
    # in-kernel cast.  Numerics are identical to casting inside the kernel.
    sa = jnp.concatenate([state.astype(jnp.float32),
                          action.astype(jnp.float32)], axis=1)
    sa = sa.astype(jnp.bfloat16)

    # bf16 weight matrices for the MXU; biases / BN params stay f32.
    w1b = w1.astype(jnp.bfloat16)
    w2b = w2.astype(jnp.bfloat16)
    w3b = w3.astype(jnp.bfloat16)
    w4r = jnp.reshape(w4, (1, H3)).astype(jnp.float32)   # fc4 as VPU reduction
    b4r = jnp.reshape(b4, (1, 1)).astype(jnp.float32)

    if batch <= _MAX_FUSED_B:
        return _fused_forward(sa, w1b, b1, w2b, b2, gamma, beta, w3b, b3, w4r, b4r)
    return _tiled_forward(batch, sa, w1b, b1, w2b, b2, gamma, beta, w3b, b3,
                          w4r, b4r)


# --------------------------------------------------------------------------
# Parameter init (matches the PyTorch __init__) and pure-JAX references.
# --------------------------------------------------------------------------
def init_params(key):
    """xavier_normal_ weights, default-uniform Linear biases, BN weight=1/bias=0.
    Weights are stored (in_features, out_features), i.e. transposed vs PyTorch."""
    def xavier_normal(k, fan_in, fan_out):
        std = math.sqrt(2.0 / (fan_in + fan_out))
        return std * jax.random.normal(k, (fan_in, fan_out), dtype=jnp.float32)

    def linear_bias(k, fan_in, fan_out):
        bound = 1.0 / math.sqrt(fan_in)
        return jax.random.uniform(k, (1, fan_out), dtype=jnp.float32,
                                  minval=-bound, maxval=bound)

    ks = jax.random.split(key, 8)
    w1 = xavier_normal(ks[0], SA_DIM, H1)
    b1 = linear_bias(ks[1], SA_DIM, H1)
    w2 = xavier_normal(ks[2], H1, H2)
    b2 = linear_bias(ks[3], H1, H2)
    gamma = jnp.ones((1, H2), dtype=jnp.float32)
    beta = jnp.zeros((1, H2), dtype=jnp.float32)
    w3 = xavier_normal(ks[4], H2, H3)
    b3 = linear_bias(ks[5], H2, H3)
    w4 = xavier_normal(ks[6], H3, 1)
    b4 = linear_bias(ks[7], H3, 1)
    return (w1, b1, w2, b2, gamma, beta, w3, b3, w4, b4)


def reference_forward(state, action, params, matmul_dtype=jnp.float32):
    """Literal transcription of Critic.forward. matmul_dtype=bfloat16 mirrors
    the kernel's MXU precision; float32 is the exact PyTorch-f32 semantics."""
    w1, b1, w2, b2, gamma, beta, w3, b3, w4, b4 = params

    def lr(x):
        return jnp.maximum(x, NEG_SLOPE * x)

    def mm(a, b):
        return jnp.dot(a.astype(matmul_dtype), b.astype(matmul_dtype),
                       preferred_element_type=jnp.float32)

    sa = jnp.concatenate([state, action], axis=1)
    q = lr(mm(sa, w1) + b1)
    q = lr(mm(q, w2) + b2)
    mean = jnp.mean(q, axis=0, keepdims=True)
    var = jnp.mean((q - mean) ** 2, axis=0, keepdims=True)
    q = (q - mean) * jax.lax.rsqrt(var + EPS) * gamma + beta
    q = lr(mm(q, w3) + b3)
    return jnp.dot(q, w4) + b4      # fc4 stays f32 in the kernel as well


if __name__ == "__main__":
    key = jax.random.PRNGKey(0)
    k_param, k_s1, k_a1, k_s2, k_a2 = jax.random.split(key, 5)
    params = init_params(k_param)

    fwd = jax.jit(critic_forward)

    # Small batch -> fused single-invocation kernel.
    b_small = 2
    state = jax.random.normal(k_s1, (b_small, STATE_DIM), dtype=jnp.float32)
    action = jax.random.normal(k_a1, (b_small, ACTION_DIM), dtype=jnp.float32)
    out = jax.block_until_ready(fwd(state, action, params))
    ref = reference_forward(state, action, params, jnp.bfloat16)
    assert out.shape == (b_small, 1)
    assert jnp.allclose(out, ref, atol=2e-3, rtol=2e-3), (out, ref)

    # Larger batch -> batch-tiled two-pass path (exercises the cross-tile BN
    # accumulation and padded-row masking).
    b_big = 1234
    state2 = jax.random.normal(k_s2, (b_big, STATE_DIM), dtype=jnp.float32)
    action2 = jax.random.normal(k_a2, (b_big, ACTION_DIM), dtype=jnp.float32)
    out2 = jax.block_until_ready(fwd(state2, action2, params))
    ref2 = reference_forward(state2, action2, params, jnp.bfloat16)
    assert out2.shape == (b_big, 1)
    assert jnp.allclose(out2, ref2, atol=2e-3, rtol=2e-3), \
        float(jnp.max(jnp.abs(out2 - ref2)))
    # Loose sanity check against the exact f32 semantics of the PyTorch module
    # (bf16 MXU inputs introduce ~1e-2 level differences).
    ref2_f32 = reference_forward(state2, action2, params, jnp.float32)
    assert jnp.allclose(out2, ref2_f32, atol=1e-1, rtol=1e-1), \
        float(jnp.max(jnp.abs(out2 - ref2_f32)))

    print("KERNEL_OK")
</pallas_src>

<mosaic_0001>
module attributes {stable_mosaic.version = 11 : i64} {
  func.func @_fused_kernel(%arg0: memref<2x19xbf16, #tpu.memory_space<vmem>>, %arg1: memref<19x400xbf16, #tpu.memory_space<vmem>>, %arg2: memref<1x400xf32, #tpu.memory_space<vmem>>, %arg3: memref<400x300xbf16, #tpu.memory_space<vmem>>, %arg4: memref<1x300xf32, #tpu.memory_space<vmem>>, %arg5: memref<1x300xf32, #tpu.memory_space<vmem>>, %arg6: memref<1x300xf32, #tpu.memory_space<vmem>>, %arg7: memref<300x200xbf16, #tpu.memory_space<vmem>>, %arg8: memref<1x200xf32, #tpu.memory_space<vmem>>, %arg9: memref<1x200xf32, #tpu.memory_space<vmem>>, %arg10: memref<1x1xf32, #tpu.memory_space<vmem>>, %arg11: memref<2x1xf32, #tpu.memory_space<vmem>>) attributes {dimension_semantics = [], scalar_prefetch = 0 : i64, scratch_operands = 0 : i64, tpu.core_type = #tpu.core_type<tc>} {
    %c0 = arith.constant 0 : index
    %c0_0 = arith.constant 0 : index
    %0 = vector.load %arg0[%c0, %c0_0] : memref<2x19xbf16, #tpu.memory_space<vmem>>, vector<2x19xbf16>
    %c0_1 = arith.constant 0 : index
    %c0_2 = arith.constant 0 : index
    %1 = vector.load %arg1[%c0_1, %c0_2] : memref<19x400xbf16, #tpu.memory_space<vmem>>, vector<19x400xbf16>
    %c0_3 = arith.constant 0 : index
    %c0_4 = arith.constant 0 : index
    %2 = vector.load %arg2[%c0_3, %c0_4] : memref<1x400xf32, #tpu.memory_space<vmem>>, vector<1x400xf32>
    %c0_5 = arith.constant 0 : index
    %c0_6 = arith.constant 0 : index
    %3 = vector.load %arg3[%c0_5, %c0_6] : memref<400x300xbf16, #tpu.memory_space<vmem>>, vector<400x300xbf16>
    %c0_7 = arith.constant 0 : index
    %c0_8 = arith.constant 0 : index
    %4 = vector.load %arg4[%c0_7, %c0_8] : memref<1x300xf32, #tpu.memory_space<vmem>>, vector<1x300xf32>
    %cst = arith.constant dense<0.000000e+00> : vector<2x400xf32>
    %5 = tpu.matmul %0, %1, %cst {dimension_numbers = #tpu.dot_dimension_numbers<[1], [0], [0], [1], [0, 0, 1, 1], [], []>} : vector<2x19xbf16>, vector<19x400xbf16>, vector<2x400xf32> -> vector<2x400xf32>
    %6 = vector.broadcast %2 : vector<1x400xf32> to vector<2x400xf32>
    %7 = arith.addf %5, %6 : vector<2x400xf32>
    %cst_9 = arith.constant 0.00999999977 : f32
    %8 = vector.broadcast %cst_9 : f32 to vector<2x400xf32>
    %9 = arith.mulf %8, %7 : vector<2x400xf32>
    %10 = arith.maximumf %7, %9 : vector<2x400xf32>
    %11 = arith.truncf %10 : vector<2x400xf32> to vector<2x400xbf16>
    %cst_10 = arith.constant dense<0.000000e+00> : vector<2x300xf32>
    %12 = tpu.matmul %11, %3, %cst_10 {dimension_numbers = #tpu.dot_dimension_numbers<[1], [0], [0], [1], [0, 0, 1, 1], [], []>} : vector<2x400xbf16>, vector<400x300xbf16>, vector<2x300xf32> -> vector<2x300xf32>
    %13 = vector.broadcast %4 : vector<1x300xf32> to vector<2x300xf32>
    %14 = arith.addf %12, %13 : vector<2x300xf32>
    %cst_11 = arith.constant 0.00999999977 : f32
    %15 = vector.broadcast %cst_11 : f32 to vector<2x300xf32>
    %16 = arith.mulf %15, %14 : vector<2x300xf32>
    %17 = arith.maximumf %14, %16 : vector<2x300xf32>
    %cst_12 = arith.constant dense<0.000000e+00> : vector<300xf32>
    %18 = vector.multi_reduction <add>, %17, %cst_12 [0] : vector<2x300xf32> to vector<300xf32>
    %19 = vector.shape_cast %18 : vector<300xf32> to vector<1x300xf32>
    %cst_13 = arith.constant 5.000000e-01 : f32
    %20 = vector.broadcast %cst_13 : f32 to vector<1x300xf32>
    %21 = arith.mulf %19, %20 : vector<1x300xf32>
    %22 = arith.mulf %17, %17 : vector<2x300xf32>
    %cst_14 = arith.constant dense<0.000000e+00> : vector<300xf32>
    %23 = vector.multi_reduction <add>, %22, %cst_14 [0] : vector<2x300xf32> to vector<300xf32>
    %24 = vector.shape_cast %23 : vector<300xf32> to vector<1x300xf32>
    %cst_15 = arith.constant 5.000000e-01 : f32
    %25 = vector.broadcast %cst_15 : f32 to vector<1x300xf32>
    %26 = arith.mulf %24, %25 : vector<1x300xf32>
    %27 = arith.mulf %21, %21 : vector<1x300xf32>
    %28 = arith.subf %26, %27 : vector<1x300xf32>
    %c0_16 = arith.constant 0 : index
    %c0_17 = arith.constant 0 : index
    %29 = vector.load %arg5[%c0_16, %c0_17] : memref<1x300xf32, #tpu.memory_space<vmem>>, vector<1x300xf32>
    %cst_18 = arith.constant 9.99999974E-6 : f32
    %30 = vector.broadcast %cst_18 : f32 to vector<1x300xf32>
    %31 = arith.addf %28, %30 : vector<1x300xf32>
    %32 = math.rsqrt %31 : vector<1x300xf32>
    %33 = arith.mulf %29, %32 : vector<1x300xf32>
    %c0_19 = arith.constant 0 : index
    %c0_20 = arith.constant 0 : index
    %34 = vector.load %arg6[%c0_19, %c0_20] : memref<1x300xf32, #tpu.memory_space<vmem>>, vector<1x300xf32>
    %35 = arith.mulf %21, %33 : vector<1x300xf32>
    %36 = arith.subf %34, %35 : vector<1x300xf32>
    %c0_21 = arith.constant 0 : index
    %c0_22 = arith.constant 0 : index
    %37 = vector.load %arg7[%c0_21, %c0_22] : memref<300x200xbf16, #tpu.memory_space<vmem>>, vector<300x200xbf16>
    %c0_23 = arith.constant 0 : index
    %c0_24 = arith.constant 0 : index
    %38 = vector.load %arg8[%c0_23, %c0_24] : memref<1x200xf32, #tpu.memory_space<vmem>>, vector<1x200xf32>
    %c0_25 = arith.constant 0 : index
    %c0_26 = arith.constant 0 : index
    %39 = vector.load %arg9[%c0_25, %c0_26] : memref<1x200xf32, #tpu.memory_space<vmem>>, vector<1x200xf32>
    %c0_27 = arith.constant 0 : index
    %c0_28 = arith.constant 0 : index
    %40 = vector.load %arg10[%c0_27, %c0_28] : memref<1x1xf32, #tpu.memory_space<vmem>>, vector<1x1xf32>
    %41 = vector.broadcast %33 : vector<1x300xf32> to vector<2x300xf32>
    %42 = arith.mulf %17, %41 : vector<2x300xf32>
    %43 = vector.broadcast %36 : vector<1x300xf32> to vector<2x300xf32>
    %44 = arith.addf %42, %43 : vector<2x300xf32>
    %45 = arith.truncf %44 : vector<2x300xf32> to vector<2x300xbf16>
    %cst_29 = arith.constant dense<0.000000e+00> : vector<2x200xf32>
    %46 = tpu.matmul %45, %37, %cst_29 {dimension_numbers = #tpu.dot_dimension_numbers<[1], [0], [0], [1], [0, 0, 1, 1], [], []>} : vector<2x300xbf16>, vector<300x200xbf16>, vector<2x200xf32> -> vector<2x200xf32>
    %47 = vector.broadcast %38 : vector<1x200xf32> to vector<2x200xf32>
    %48 = arith.addf %46, %47 : vector<2x200xf32>
    %cst_30 = arith.constant 0.00999999977 : f32
    %49 = vector.broadcast %cst_30 : f32 to vector<2x200xf32>
    %50 = arith.mulf %49, %48 : vector<2x200xf32>
    %51 = arith.maximumf %48, %50 : vector<2x200xf32>
    %52 = vector.broadcast %39 : vector<1x200xf32> to vector<2x200xf32>
    %53 = arith.mulf %51, %52 : vector<2x200xf32>
    %cst_31 = arith.constant dense<0.000000e+00> : vector<2xf32>
    %54 = vector.multi_reduction <add>, %53, %cst_31 [1] : vector<2x200xf32> to vector<2xf32>
    %55 = vector.shape_cast %54 : vector<2xf32> to vector<2x1xf32>
    %56 = vector.broadcast %40 : vector<1x1xf32> to vector<2x1xf32>
    %57 = arith.addf %55, %56 : vector<2x1xf32>
    %c0_32 = arith.constant 0 : index
    %c0_33 = arith.constant 0 : index
    %58 = vector.load %arg11[%c0_32, %c0_33] : memref<2x1xf32, #tpu.memory_space<vmem>>, vector<2x1xf32>
    tpu.vector_store %arg11[%c0_32, %c0_33], %57 {strides = array<i32>} : memref<2x1xf32, #tpu.memory_space<vmem>>, vector<2x1xf32>,
    return
  }
}

</mosaic_0001>

<llo_original>
// kernel: critic_forward.1
$region0: #{critic_forward.1}
  #allocation0 [shape = 'u32[]', space=smem, size = 0x4, offset = 0x4, fixed_abs, tag = 'smem constant byte address 0x4 - core index']
  #allocation1 [shape = 'u32[144,128]{1,0:T(1,128)}', space=vmem, size = 0x12000, scoped, tag = 'internal scratch']
  #allocation2 [shape = 'f32[1,1]{1,0:T(1,128)S(1)}', space=vmem, size = 0x200, scoped, tag = 'scoped memory for critic_forward.1']
  %s0 = inlined_call_operand.vmem [shape: bf16[2,19], index: 0, kind: input, shape index: {}]
  %s1 = inlined_call_operand.vmem [shape: bf16[19,400], index: 1, kind: input, shape index: {}]
  %s2 = inlined_call_operand.vmem [shape: f32[1,400], index: 2, kind: input, shape index: {}]
  %s3 = inlined_call_operand.vmem [shape: bf16[400,300], index: 3, kind: input, shape index: {}]
  %s4 = inlined_call_operand.vmem [shape: f32[1,300], index: 4, kind: input, shape index: {}]
  %s5 = inlined_call_operand.vmem [shape: f32[1,300], index: 5, kind: input, shape index: {}]
  %s6 = inlined_call_operand.vmem [shape: f32[1,300], index: 6, kind: input, shape index: {}]
  %s7 = inlined_call_operand.vmem [shape: bf16[300,200], index: 7, kind: input, shape index: {}]
  %s8 = inlined_call_operand.vmem [shape: f32[1,200], index: 8, kind: input, shape index: {}]
  %s9 = inlined_call_operand.vmem [shape: f32[1,200], index: 9, kind: input, shape index: {}]
  %s10 = inlined_call_operand.<no memory space> [shape: f32[1,1], index: 10, kind: input, shape index: {}]
  %s11 = inlined_call_operand.vmem [shape: f32[2,1], index: 11, kind: output, shape index: {}]
  %s12 = sld [smem:[#allocation0]]
  $region54: #{critic_forward.1} parent=0
    _
  %s14 = ssub.s32 1, %s12
  %s15 = scalar_select 0, %s14, %s12
  %v16 = vstv %s10
  %17 = vst [vmem:[#allocation2] sm:$0x1] %v16
  // Predicated region
  $region2: #{critic_forward.1} parent=0 // pred_check
    _
  $region3: #{critic_forward.1} parent=0 // pred_check_branch
    %19 = sbr.rel (0) target = $region5
  $region4: #{critic_forward.1} parent=0 // pred_region
    _
  $region5: #{critic_forward.1} parent=0 // pred_fallthru
    _
  // Predicated region
  $region6: #{critic_forward.1} parent=0 // pred_check
    _
  $region7: #{critic_forward.1} parent=0 // pred_check_branch
    %21 = sbr.rel (0) target = $region9
  $region8: #{critic_forward.1} parent=0 // pred_region
    _
  $region9: #{critic_forward.1} parent=0 // pred_fallthru
    _
  // Predicated region
  $region10: #{critic_forward.1} parent=0 // pred_check
    _
  $region11: #{critic_forward.1} parent=0 // pred_check_branch
    %23 = sbr.rel (0) target = $region13
  $region12: #{critic_forward.1} parent=0 // pred_region
    _
  $region13: #{critic_forward.1} parent=0 // pred_fallthru
    _
  // Predicated region
  $region14: #{critic_forward.1} parent=0 // pred_check
    _
  $region15: #{critic_forward.1} parent=0 // pred_check_branch
    %25 = sbr.rel (0) target = $region17
  $region16: #{critic_forward.1} parent=0 // pred_region
    _
  $region17: #{critic_forward.1} parent=0 // pred_fallthru
    _
  // Predicated region
  $region18: #{critic_forward.1} parent=0 // pred_check
    _
  $region19: #{critic_forward.1} parent=0 // pred_check_branch
    %27 = sbr.rel (0) target = $region21
  $region20: #{critic_forward.1} parent=0 // pred_region
    _
  $region21: #{critic_forward.1} parent=0 // pred_fallthru
    _
  // Predicated region
  $region22: #{critic_forward.1} parent=0 // pred_check
    _
  $region23: #{critic_forward.1} parent=0 // pred_check_branch
    %29 = sbr.rel (0) target = $region25
  $region24: #{critic_forward.1} parent=0 // pred_region
    _
  $region25: #{critic_forward.1} parent=0 // pred_fallthru
    _
  // Predicated region
  $region26: #{critic_forward.1} parent=0 // pred_check
    _
  $region27: #{critic_forward.1} parent=0 // pred_check_branch
    %31 = sbr.rel (0) target = $region29
  $region28: #{critic_forward.1} parent=0 // pred_region
    _
  $region29: #{critic_forward.1} parent=0 // pred_fallthru
    _
  // Predicated region
  $region30: #{critic_forward.1} parent=0 // pred_check
    _
  $region31: #{critic_forward.1} parent=0 // pred_check_branch
    %33 = sbr.rel (0) target = $region33
  $region32: #{critic_forward.1} parent=0 // pred_region
    _
  $region33: #{critic_forward.1} parent=0 // pred_fallthru
    _
  // Predicated region
  $region34: #{critic_forward.1} parent=0 // pred_check
    _
  $region35: #{critic_forward.1} parent=0 // pred_check_branch
    %35 = sbr.rel (0) target = $region37
  $region36: #{critic_forward.1} parent=0 // pred_region
    _
  $region37: #{critic_forward.1} parent=0 // pred_fallthru
    _
  // Predicated region
  $region38: #{critic_forward.1} parent=0 // pred_check
    _
  $region39: #{critic_forward.1} parent=0 // pred_check_branch
    %37 = sbr.rel (0) target = $region41
  $region40: #{critic_forward.1} parent=0 // pred_region
    _
  $region41: #{critic_forward.1} parent=0 // pred_fallthru
    _
  // Predicated region
  $region42: #{critic_forward.1} parent=0 // pred_check
    _
  $region43: #{critic_forward.1} parent=0 // pred_check_branch
    %39 = sbr.rel (0) target = $region45
  $region44: #{critic_forward.1} parent=0 // pred_region
    _
  $region45: #{critic_forward.1} parent=0 // pred_fallthru
    _
  %v41 = vld [vmem:[%s0] sm:$0x1]
  %v42 = vld [vmem:[%s1] sm:$0xff]
  %v43 = vld [vmem:[%s1 + $0x8] sm:$0xff]
  %v44 = vld [vmem:[%s1 + $0x10] sm:$0xff]
  %v45 = vld [vmem:[%s1 + $0x18] sm:$0xff]
  %v46 = vld [vmem:[%s1 + $0x20] sm:$0x33]
  %v47 = vld [vmem:[%s1 + $0x28] sm:$0x33]
  %v48 = vld [vmem:[%s2] sm:$0xf]
  %v49 = vld [vmem:[%s3] sm:$0xff]
  %v50 = vld [vmem:[%s3 + $0x8] sm:$0xf]
  %v51 = vld [vmem:[%s3 + $0xc] sm:$0xff]
  %v52 = vld [vmem:[%s3 + $0x14] sm:$0xf]
  %v53 = vld [vmem:[%s3 + $0x18] sm:$0xff]
  %v54 = vld [vmem:[%s3 + $0x20] sm:$0xf]
  %v55 = vld [vmem:[%s3 + $0x24] sm:$0xff]
  %v56 = vld [vmem:[%s3 + $0x2c] sm:$0xf]
  %v57 = vld [vmem:[%s3 + $0x30] sm:$0xff]
  %v58 = vld [vmem:[%s3 + $0x38] sm:$0xf]
  %v59 = vld [vmem:[%s3 + $0x3c] sm:$0xff]
  %v60 = vld [vmem:[%s3 + $0x44] sm:$0xf]
  %v61 = vld [vmem:[%s3 + $0x48] sm:$0xff]
  %v62 = vld [vmem:[%s3 + $0x50] sm:$0xf]
  %v63 = vld [vmem:[%s3 + $0x54] sm:$0xff]
  %v64 = vld [vmem:[%s3 + $0x5c] sm:$0xf]
  %v65 = vld [vmem:[%s3 + $0x60] sm:$0xff]
  %v66 = vld [vmem:[%s3 + $0x68] sm:$0xf]
  %v67 = vld [vmem:[%s3 + $0x6c] sm:$0xff]
  %v68 = vld [vmem:[%s3 + $0x74] sm:$0xf]
  %v69 = vld [vmem:[%s3 + $0x78] sm:$0xff]
  %v70 = vld [vmem:[%s3 + $0x80] sm:$0xf]
  %v71 = vld [vmem:[%s3 + $0x84] sm:$0xff]
  %v72 = vld [vmem:[%s3 + $0x8c] sm:$0xf]
  %v73 = vld [vmem:[%s3 + $0x90] sm:$0xff]
  %v74 = vld [vmem:[%s3 + $0x98] sm:$0xf]
  %v75 = vld [vmem:[%s3 + $0x9c] sm:$0xff]
  %v76 = vld [vmem:[%s3 + $0xa4] sm:$0xf]
  %v77 = vld [vmem:[%s3 + $0xa8] sm:$0xff]
  %v78 = vld [vmem:[%s3 + $0xb0] sm:$0xf]
  %v79 = vld [vmem:[%s3 + $0xb4] sm:$0xff]
  %v80 = vld [vmem:[%s3 + $0xbc] sm:$0xf]
  %v81 = vld [vmem:[%s3 + $0xc0] sm:$0xff]
  %v82 = vld [vmem:[%s3 + $0xc8] sm:$0xf]
  %v83 = vld [vmem:[%s3 + $0xcc] sm:$0xff]
  %v84 = vld [vmem:[%s3 + $0xd4] sm:$0xf]
  %v85 = vld [vmem:[%s3 + $0xd8] sm:$0xff]
  %v86 = vld [vmem:[%s3 + $0xe0] sm:$0xf]
  %v87 = vld [vmem:[%s3 + $0xe4] sm:$0xff]
  %v88 = vld [vmem:[%s3 + $0xec] sm:$0xf]
  %v89 = vld [vmem:[%s3 + $0xf0] sm:$0xff]
  %v90 = vld [vmem:[%s3 + $0xf8] sm:$0xf]
  %v91 = vld [vmem:[%s3 + $0xfc] sm:$0xff]
  %v92 = vld [vmem:[%s3 + $0x104] sm:$0xf]
  %v93 = vld [vmem:[%s3 + $0x108] sm:$0xff]
  %v94 = vld [vmem:[%s3 + $0x110] sm:$0xf]
  %v95 = vld [vmem:[%s3 + $0x114] sm:$0xff]
  %v96 = vld [vmem:[%s3 + $0x11c] sm:$0xf]
  %v97 = vld [vmem:[%s3 + $0x120] sm:$0xff]
  %v98 = vld [vmem:[%s3 + $0x128] sm:$0xf]
  %v99 = vld [vmem:[%s3 + $0x12c] sm:$0xff]
  %v100 = vld [vmem:[%s3 + $0x134] sm:$0xf]
  %v101 = vld [vmem:[%s3 + $0x138] sm:$0xff]
  %v102 = vld [vmem:[%s3 + $0x140] sm:$0xf]
  %v103 = vld [vmem:[%s3 + $0x144] sm:$0xff]
  %v104 = vld [vmem:[%s3 + $0x14c] sm:$0xf]
  %v105 = vld [vmem:[%s3 + $0x150] sm:$0xff]
  %v106 = vld [vmem:[%s3 + $0x158] sm:$0xf]
  %v107 = vld [vmem:[%s3 + $0x15c] sm:$0xff]
  %v108 = vld [vmem:[%s3 + $0x164] sm:$0xf]
  %v109 = vld [vmem:[%s3 + $0x168] sm:$0xff]
  %v110 = vld [vmem:[%s3 + $0x170] sm:$0xf]
  %v111 = vld [vmem:[%s3 + $0x174] sm:$0xff]
  %v112 = vld [vmem:[%s3 + $0x17c] sm:$0xf]
  %v113 = vld [vmem:[%s3 + $0x180] sm:$0xff]
  %v114 = vld [vmem:[%s3 + $0x188] sm:$0xf]
  %v115 = vld [vmem:[%s3 + $0x18c] sm:$0xff]
  %v116 = vld [vmem:[%s3 + $0x194] sm:$0xf]
  %v117 = vld [vmem:[%s3 + $0x198] sm:$0xff]
  %v118 = vld [vmem:[%s3 + $0x1a0] sm:$0xf]
  %v119 = vld [vmem:[%s3 + $0x1a4] sm:$0xff]
  %v120 = vld [vmem:[%s3 + $0x1ac] sm:$0xf]
  %v121 = vld [vmem:[%s3 + $0x1b0] sm:$0xff]
  %v122 = vld [vmem:[%s3 + $0x1b8] sm:$0xf]
  %v123 = vld [vmem:[%s3 + $0x1bc] sm:$0xff]
  %v124 = vld [vmem:[%s3 + $0x1c4] sm:$0xf]
  %v125 = vld [vmem:[%s3 + $0x1c8] sm:$0xff]
  %v126 = vld [vmem:[%s3 + $0x1d0] sm:$0xf]
  %v127 = vld [vmem:[%s3 + $0x1d4] sm:$0xff]
  %v128 = vld [vmem:[%s3 + $0x1dc] sm:$0xf]
  %v129 = vld [vmem:[%s3 + $0x1e0] sm:$0xff]
  %v130 = vld [vmem:[%s3 + $0x1e8] sm:$0xf]
  %v131 = vld [vmem:[%s3 + $0x1ec] sm:$0xff]
  %v132 = vld [vmem:[%s3 + $0x1f4] sm:$0xf]
  %v133 = vld [vmem:[%s3 + $0x1f8] sm:$0xff]
  %v134 = vld [vmem:[%s3 + $0x200] sm:$0xf]
  %v135 = vld [vmem:[%s3 + $0x204] sm:$0xff]
  %v136 = vld [vmem:[%s3 + $0x20c] sm:$0xf]
  %v137 = vld [vmem:[%s3 + $0x210] sm:$0xff]
  %v138 = vld [vmem:[%s3 + $0x218] sm:$0xf]
  %v139 = vld [vmem:[%s3 + $0x21c] sm:$0xff]
  %v140 = vld [vmem:[%s3 + $0x224] sm:$0xf]
  %v141 = vld [vmem:[%s3 + $0x228] sm:$0xff]
  %v142 = vld [vmem:[%s3 + $0x230] sm:$0xf]
  %v143 = vld [vmem:[%s3 + $0x234] sm:$0xff]
  %v144 = vld [vmem:[%s3 + $0x23c] sm:$0xf]
  %v145 = vld [vmem:[%s3 + $0x240] sm:$0xff]
  %v146 = vld [vmem:[%s3 + $0x248] sm:$0xf]
  %v147 = vld [vmem:[%s3 + $0x24c] sm:$0xff]
  %v148 = vld [vmem:[%s3 + $0x254] sm:$0xf]
  %v149 = vld [vmem:[%s4] sm:$0x7]
  %v151 = vlaneseq
  %v152 = vshrl.u32 %v151, 7
  %v153 = vsub.s32 0, %v152
  %v154 = vrot.slane %v48, %v153
  %v155 = vlaneseq
  %v156 = vshrl.u32 %v155, 7
  %v157 = vsub.s32 1, %v156
  %v158 = vrot.slane %v48, %v157
  %v159 = vlaneseq
  %v160 = vshrl.u32 %v159, 7
  %v161 = vsub.s32 2, %v160
  %v162 = vrot.slane %v48, %v161
  %v163 = vlaneseq
  %v164 = vshrl.u32 %v163, 7
  %v165 = vsub.s32 3, %v164
  %v166 = vrot.slane %v48, %v165
  %v177 = vunpack.c.l.b16 %v42
  %v178 = vunpack.c.h.b16 %v42
  %v179 = vunpack.c.l.b16 %v43
  %v180 = vunpack.c.h.b16 %v43
  %v181 = vunpack.c.l.b16 %v44
  %v182 = vunpack.c.h.b16 %v44
  %v183 = vunpack.c.l.b16 %v45
  %v184 = vunpack.c.h.b16 %v45
  %v185 = vunpack.c.l.b16 %v46
  %v186 = vunpack.c.h.b16 %v46
  %v187 = vunpack.c.l.b16 %v47
  %v188 = vunpack.c.h.b16 %v47
  %v189 = vpack.c.b16 %v181, %v177
  %v190 = vpack.c.b16 %v182, %v178
  %v191 = vpack.c.b16 %v183, %v179
  %v192 = vpack.c.b16 %v184, %v180
  %v193 = vpack.c.b16 %v185, %v185
  %v194 = vpack.c.b16 %v186, %v186
  %v195 = vpack.c.b16 %v187, %v187
  %v196 = vpack.c.b16 %v188, %v188
  %vm201 = vcmask 154624
  %v203 = vsel %vm201, %v41, 0
  %vm205 = vcmask 1040384
  %vm206 = vcmask 1041408
  %v207 = vsel %vm205, 4294967295, 65535
  %v208 = vsel %vm206, %v207, 0
  %v210 = vand.u32 %v193, %v208
  %v213 = vand.u32 %v194, %v208
  %v216 = vand.u32 %v195, %v208
  %v219 = vand.u32 %v196, %v208
  %221 = vmatprep.subr.bf16.mxu0 %v190
  %222 = vmatpush1.bf16.msra.mxu0 %v189
  %223 = vmatprep.subr.bf16.mxu0 %v213
  %224 = vmatpush1.bf16.msra.mxu0 %v210
  %225 = vmatprep.subr.bf16.mxu0 0
  %226 = vmatpush1.bf16.msra.mxu0 0
  %227 = vmatprep.subr.bf16.mxu0 0
  %228 = vmatpush1.bf16.msra.mxu0 0
  %229 = vmatprep.subr.bf16.mxu0 0
  %230 = vmatpush1.bf16.msra.mxu0 0
  %231 = vmatprep.subr.bf16.mxu0 0
  %232 = vmatpush1.bf16.msra.mxu0 0
  %233 = vmatprep.subr.bf16.mxu0 0
  %234 = vmatpush1.bf16.msra.mxu0 0
  %235 = vmatprep.subr.bf16.mxu0 0
  %236 = vmatpush1.bf16.msra.mxu0 0
  %237 = vmatprep.subr.bf16.mxu0 0
  %238 = vmatpush1.bf16.msra.mxu0 0
  %239 = vmatprep.subr.bf16.mxu0 0
  %240 = vmatpush1.bf16.msra.mxu0 0
  %241 = vmatprep.subr.bf16.mxu0 0
  %242 = vmatpush1.bf16.msra.mxu0 0
  %243 = vmatprep.subr.bf16.mxu0 0
  %244 = vmatpush1.bf16.msra.mxu0 0
  %245 = vmatprep.subr.bf16.mxu0 0
  %246 = vmatpush1.bf16.msra.mxu0 0
  %247 = vmatprep.subr.bf16.mxu0 0
  %248 = vmatpush1.bf16.msra.mxu0 0
  %249 = vmatprep.subr.bf16.mxu0 0
  %250 = vmatpush1.bf16.msra.mxu0 0
  %251 = vmatprep.subr.bf16.mxu0 0
  %252 = vmatpush1.bf16.msra.mxu0 0
  %253 = vmatprep.mubr.bf16.mxu0 0
  %254 = vmatmul.mubr.bf16.gmra.mrb[0].mxu0 %v203
  %v255 = vpop.f32.mrb[0].mxu0
  %v256 = vadd.f32 %v154, %v255
  %v257 = vpop.f32.mrb[0].mxu0
  %v258 = vadd.f32 %v158, %v257
  %v259 = vpop.f32.mrb[0].mxu0
  %v260 = vpop.f32.mrb[0].mxu0
  %261 = vdwg.mxu0
  %262 = vmatprep.subr.bf16.mxu0 %v192
  %263 = vmatpush1.bf16.msra.mxu0 %v191
  %264 = vmatprep.subr.bf16.mxu0 %v219
  %265 = vmatpush1.bf16.msra.mxu0 %v216
  %266 = vmatprep.subr.bf16.mxu0 0
  %267 = vmatpush1.bf16.msra.mxu0 0
  %268 = vmatprep.subr.bf16.mxu0 0
  %269 = vmatpush1.bf16.msra.mxu0 0
  %270 = vmatprep.subr.bf16.mxu0 0
  %271 = vmatpush1.bf16.msra.mxu0 0
  %272 = vmatprep.subr.bf16.mxu0 0
  %273 = vmatpush1.bf16.msra.mxu0 0
  %274 = vmatprep.subr.bf16.mxu0 0
  %275 = vmatpush1.bf16.msra.mxu0 0
  %276 = vmatprep.subr.bf16.mxu0 0
  %277 = vmatpush1.bf16.msra.mxu0 0
  %278 = vmatprep.subr.bf16.mxu0 0
  %279 = vmatpush1.bf16.msra.mxu0 0
  %280 = vmatprep.subr.bf16.mxu0 0
  %281 = vmatpush1.bf16.msra.mxu0 0
  %282 = vmatprep.subr.bf16.mxu0 0
  %283 = vmatpush1.bf16.msra.mxu0 0
  %284 = vmatprep.subr.bf16.mxu0 0
  %285 = vmatpush1.bf16.msra.mxu0 0
  %286 = vmatprep.subr.bf16.mxu0 0
  %287 = vmatpush1.bf16.msra.mxu0 0
  %288 = vmatprep.subr.bf16.mxu0 0
  %289 = vmatpush1.bf16.msra.mxu0 0
  %290 = vmatprep.subr.bf16.mxu0 0
  %291 = vmatpush1.bf16.msra.mxu0 0
  %292 = vmatprep.subr.bf16.mxu0 0
  %293 = vmatpush1.bf16.msra.mxu0 0
  %294 = vmatprep.mubr.bf16.mxu0 0
  %295 = vmatmul.mubr.bf16.gmra.mrb[0].mxu0 %v203
  %v296 = vpop.f32.mrb[0].mxu0
  %v297 = vadd.f32 %v162, %v296
  %v298 = vpop.f32.mrb[0].mxu0
  %v299 = vadd.f32 %v166, %v298
  %v300 = vpop.f32.mrb[0].mxu0
  %v301 = vpop.f32.mrb[0].mxu0
  %302 = vdwg.mxu0
  %v303 = vmul.f32 %v256, 0.01
  %v304 = vmul.f32 %v258, 0.01
  %v305 = vmul.f32 %v297, 0.01
  %v306 = vmul.f32 %v299, 0.01
  %v307 = vmax.f32 %v256, %v303
  %v308 = vmax.f32 %v258, %v304
  %v309 = vmax.f32 %v297, %v305
  %v310 = vmax.f32 %v299, %v306
  %v311 = vpack.c.bf16 %v307, %v307
  %v312 = vpack.c.bf16 %v308, %v308
  %v313 = vpack.c.bf16 %v309, %v309
  %v314 = vpack.c.bf16 %v310, %v310
  %v316 = vlaneseq
  %v317 = vshrl.u32 %v316, 7
  %v318 = vsub.s32 0, %v317
  %v319 = vrot.slane %v149, %v318
  %v320 = vlaneseq
  %v321 = vshrl.u32 %v320, 7
  %v322 = vsub.s32 1, %v321
  %v323 = vrot.slane %v149, %v322
  %v324 = vlaneseq
  %v325 = vshrl.u32 %v324, 7
  %v326 = vsub.s32 2, %v325
  %v327 = vrot.slane %v149, %v326
  %v431 = vunpack.c.l.b16 %v49
  %v432 = vunpack.c.h.b16 %v49
  %v433 = vunpack.c.l.b16 %v50
  %v434 = vunpack.c.l.b16 %v51
  %v435 = vunpack.c.h.b16 %v51
  %v436 = vunpack.c.l.b16 %v52
  %v437 = vunpack.c.l.b16 %v53
  %v438 = vunpack.c.h.b16 %v53
  %v439 = vunpack.c.l.b16 %v54
  %v440 = vunpack.c.l.b16 %v55
  %v441 = vunpack.c.h.b16 %v55
  %v442 = vunpack.c.l.b16 %v56
  %v443 = vunpack.c.l.b16 %v57
  %v444 = vunpack.c.h.b16 %v57
  %v445 = vunpack.c.l.b16 %v58
  %v446 = vunpack.c.l.b16 %v59
  %v447 = vunpack.c.h.b16 %v59
  %v448 = vunpack.c.l.b16 %v60
  %v449 = vunpack.c.l.b16 %v61
  %v450 = vunpack.c.h.b16 %v61
  %v451 = vunpack.c.l.b16 %v62
  %v452 = vunpack.c.l.b16 %v63
  %v453 = vunpack.c.h.b16 %v63
  %v454 = vunpack.c.l.b16 %v64
  %v455 = vunpack.c.l.b16 %v65
  %v456 = vunpack.c.h.b16 %v65
  %v457 = vunpack.c.l.b16 %v66
  %v458 = vunpack.c.l.b16 %v67
  %v459 = vunpack.c.h.b16 %v67
  %v460 = vunpack.c.l.b16 %v68
  %v461 = vunpack.c.l.b16 %v69
  %v462 = vunpack.c.h.b16 %v69
  %v463 = vunpack.c.l.b16 %v70
  %v464 = vunpack.c.l.b16 %v71
  %v465 = vunpack.c.h.b16 %v71
  %v466 = vunpack.c.l.b16 %v72
  %v467 = vunpack.c.l.b16 %v73
  %v468 = vunpack.c.h.b16 %v73
  %v469 = vunpack.c.l.b16 %v74
  %v470 = vunpack.c.l.b16 %v75
  %v471 = vunpack.c.h.b16 %v75
  %v472 = vunpack.c.l.b16 %v76
  %v473 = vunpack.c.l.b16 %v77
  %v474 = vunpack.c.h.b16 %v77
  %v475 = vunpack.c.l.b16 %v78
  %v476 = vunpack.c.l.b16 %v79
  %v477 = vunpack.c.h.b16 %v79
  %v478 = vunpack.c.l.b16 %v80
  %v479 = vunpack.c.l.b16 %v81
  %v480 = vunpack.c.h.b16 %v81
  %v481 = vunpack.c.l.b16 %v82
  %v482 = vunpack.c.l.b16 %v83
  %v483 = vunpack.c.h.b16 %v83
  %v484 = vunpack.c.l.b16 %v84
  %v485 = vunpack.c.l.b16 %v85
  %v486 = vunpack.c.h.b16 %v85
  %v487 = vunpack.c.l.b16 %v86
  %v488 = vunpack.c.l.b16 %v87
  %v489 = vunpack.c.h.b16 %v87
  %v490 = vunpack.c.l.b16 %v88
  %v491 = vunpack.c.l.b16 %v89
  %v492 = vunpack.c.h.b16 %v89
  %v493 = vunpack.c.l.b16 %v90
  %v494 = vunpack.c.l.b16 %v91
  %v495 = vunpack.c.h.b16 %v91
  %v496 = vunpack.c.l.b16 %v92
  %v497 = vunpack.c.l.b16 %v93
  %v498 = vunpack.c.h.b16 %v93
  %v499 = vunpack.c.l.b16 %v94
  %v500 = vunpack.c.l.b16 %v95
  %v501 = vunpack.c.h.b16 %v95
  %v502 = vunpack.c.l.b16 %v96
  %v503 = vunpack.c.l.b16 %v97
  %v504 = vunpack.c.h.b16 %v97
  %v505 = vunpack.c.l.b16 %v98
  %v506 = vunpack.c.l.b16 %v99
  %v507 = vunpack.c.h.b16 %v99
  %v508 = vunpack.c.l.b16 %v100
  %v509 = vunpack.c.l.b16 %v101
  %v510 = vunpack.c.h.b16 %v101
  %v511 = vunpack.c.l.b16 %v102
  %v512 = vunpack.c.l.b16 %v103
  %v513 = vunpack.c.h.b16 %v103
  %v514 = vunpack.c.l.b16 %v104
  %v515 = vunpack.c.l.b16 %v105
  %v516 = vunpack.c.h.b16 %v105
  %v517 = vunpack.c.l.b16 %v106
  %v518 = vunpack.c.l.b16 %v107
  %v519 = vunpack.c.h.b16 %v107
  %v520 = vunpack.c.l.b16 %v108
  %v521 = vunpack.c.l.b16 %v109
  %v522 = vunpack.c.h.b16 %v109
  %v523 = vunpack.c.l.b16 %v110
  %v524 = vunpack.c.l.b16 %v111
  %v525 = vunpack.c.h.b16 %v111
  %v526 = vunpack.c.l.b16 %v112
  %v527 = vunpack.c.l.b16 %v113
  %v528 = vunpack.c.h.b16 %v113
  %v529 = vunpack.c.l.b16 %v114
  %v530 = vunpack.c.l.b16 %v115
  %v531 = vunpack.c.h.b16 %v115
  %v532 = vunpack.c.l.b16 %v116
  %v533 = vunpack.c.l.b16 %v117
  %v534 = vunpack.c.h.b16 %v117
  %v535 = vunpack.c.l.b16 %v118
  %v536 = vunpack.c.l.b16 %v119
  %v537 = vunpack.c.h.b16 %v119
  %v538 = vunpack.c.l.b16 %v120
  %v539 = vunpack.c.l.b16 %v121
  %v540 = vunpack.c.h.b16 %v121
  %v541 = vunpack.c.l.b16 %v122
  %v542 = vunpack.c.l.b16 %v123
  %v543 = vunpack.c.h.b16 %v123
  %v544 = vunpack.c.l.b16 %v124
  %v545 = vunpack.c.l.b16 %v125
  %v546 = vunpack.c.h.b16 %v125
  %v547 = vunpack.c.l.b16 %v126
  %v548 = vunpack.c.l.b16 %v127
  %v549 = vunpack.c.h.b16 %v127
  %v550 = vunpack.c.l.b16 %v128
  %v551 = vunpack.c.l.b16 %v129
  %v552 = vunpack.c.h.b16 %v129
  %v553 = vunpack.c.l.b16 %v130
  %v554 = vunpack.c.l.b16 %v131
  %v555 = vunpack.c.h.b16 %v131
  %v556 = vunpack.c.l.b16 %v132
  %v557 = vunpack.c.l.b16 %v133
  %v558 = vunpack.c.h.b16 %v133
  %v559 = vunpack.c.l.b16 %v134
  %v560 = vunpack.c.l.b16 %v135
  %v561 = vunpack.c.h.b16 %v135
  %v562 = vunpack.c.l.b16 %v136
  %v563 = vunpack.c.l.b16 %v137
  %v564 = vunpack.c.h.b16 %v137
  %v565 = vunpack.c.l.b16 %v138
  %v566 = vunpack.c.l.b16 %v139
  %v567 = vunpack.c.h.b16 %v139
  %v568 = vunpack.c.l.b16 %v140
  %v569 = vunpack.c.l.b16 %v141
  %v570 = vunpack.c.h.b16 %v141
  %v571 = vunpack.c.l.b16 %v142
  %v572 = vunpack.c.l.b16 %v143
  %v573 = vunpack.c.h.b16 %v143
  %v574 = vunpack.c.l.b16 %v144
  %v575 = vunpack.c.l.b16 %v145
  %v576 = vunpack.c.h.b16 %v145
  %v577 = vunpack.c.l.b16 %v146
  %v578 = vunpack.c.l.b16 %v147
  %v579 = vunpack.c.h.b16 %v147
  %v580 = vunpack.c.l.b16 %v148
  %v581 = vpack.c.b16 %v434, %v431
  %v582 = vpack.c.b16 %v435, %v432
  %v583 = vpack.c.b16 %v436, %v433
  %v584 = vpack.c.b16 %v440, %v437
  %v585 = vpack.c.b16 %v441, %v438
  %v586 = vpack.c.b16 %v442, %v439
  %v587 = vpack.c.b16 %v446, %v443
  %v588 = vpack.c.b16 %v447, %v444
  %v589 = vpack.c.b16 %v448, %v445
  %v590 = vpack.c.b16 %v452, %v449
  %v591 = vpack.c.b16 %v453, %v450
  %v592 = vpack.c.b16 %v454, %v451
  %v593 = vpack.c.b16 %v458, %v455
  %v594 = vpack.c.b16 %v459, %v456
  %v595 = vpack.c.b16 %v460, %v457
  %v596 = vpack.c.b16 %v464, %v461
  %v597 = vpack.c.b16 %v465, %v462
  %v598 = vpack.c.b16 %v466, %v463
  %v599 = vpack.c.b16 %v470, %v467
  %v600 = vpack.c.b16 %v471, %v468
  %v601 = vpack.c.b16 %v472, %v469
  %v602 = vpack.c.b16 %v476, %v473
  %v603 = vpack.c.b16 %v477, %v474
  %v604 = vpack.c.b16 %v478, %v475
  %v605 = vpack.c.b16 %v482, %v479
  %v606 = vpack.c.b16 %v483, %v480
  %v607 = vpack.c.b16 %v484, %v481
  %v608 = vpack.c.b16 %v488, %v485
  %v609 = vpack.c.b16 %v489, %v486
  %v610 = vpack.c.b16 %v490, %v487
  %v611 = vpack.c.b16 %v494, %v491
  %v612 = vpack.c.b16 %v495, %v492
  %v613 = vpack.c.b16 %v496, %v493
  %v614 = vpack.c.b16 %v500, %v497
  %v615 = vpack.c.b16 %v501, %v498
  %v616 = vpack.c.b16 %v502, %v499
  %v617 = vpack.c.b16 %v506, %v503
  %v618 = vpack.c.b16 %v507, %v504
  %v619 = vpack.c.b16 %v508, %v505
  %v620 = vpack.c.b16 %v512, %v509
  %v621 = vpack.c.b16 %v513, %v510
  %v622 = vpack.c.b16 %v514, %v511
  %v623 = vpack.c.b16 %v518, %v515
  %v624 = vpack.c.b16 %v519, %v516
  %v625 = vpack.c.b16 %v520, %v517
  %v626 = vpack.c.b16 %v524, %v521
  %v627 = vpack.c.b16 %v525, %v522
  %v628 = vpack.c.b16 %v526, %v523
  %v629 = vpack.c.b16 %v530, %v527
  %v630 = vpack.c.b16 %v531, %v528
  %v631 = vpack.c.b16 %v532, %v529
  %v632 = vpack.c.b16 %v536, %v533
  %v633 = vpack.c.b16 %v537, %v534
  %v634 = vpack.c.b16 %v538, %v535
  %v635 = vpack.c.b16 %v542, %v539
  %v636 = vpack.c.b16 %v543, %v540
  %v637 = vpack.c.b16 %v544, %v541
  %v638 = vpack.c.b16 %v548, %v545
  %v639 = vpack.c.b16 %v549, %v546
  %v640 = vpack.c.b16 %v550, %v547
  %v641 = vpack.c.b16 %v554, %v551
  %v642 = vpack.c.b16 %v555, %v552
  %v643 = vpack.c.b16 %v556, %v553
  %v644 = vpack.c.b16 %v560, %v557
  %v645 = vpack.c.b16 %v561, %v558
  %v646 = vpack.c.b16 %v562, %v559
  %v647 = vpack.c.b16 %v566, %v563
  %v648 = vpack.c.b16 %v567, %v564
  %v649 = vpack.c.b16 %v568, %v565
  %v650 = vpack.c.b16 %v572, %v569
  %v651 = vpack.c.b16 %v573, %v570
  %v652 = vpack.c.b16 %v574, %v571
  %v653 = vpack.c.b16 %v578, %v575
  %v654 = vpack.c.b16 %v579, %v576
  %v655 = vpack.c.b16 %v580, %v577
  %vm731 = vcmask 130048
  %v733 = vsel %vm731, %v314, 0
  %735 = vmatprep.subr.bf16.mxu0 %v582
  %736 = vmatpush1.bf16.msra.mxu0 %v581
  %737 = vmatprep.subr.bf16.mxu0 %v585
  %738 = vmatpush1.bf16.msra.mxu0 %v584
  %739 = vmatprep.subr.bf16.mxu0 %v588
  %740 = vmatpush1.bf16.msra.mxu0 %v587
  %741 = vmatprep.subr.bf16.mxu0 %v591
  %742 = vmatpush1.bf16.msra.mxu0 %v590
  %743 = vmatprep.subr.bf16.mxu0 %v594
  %744 = vmatpush1.bf16.msra.mxu0 %v593
  %745 = vmatprep.subr.bf16.mxu0 %v597
  %746 = vmatpush1.bf16.msra.mxu0 %v596
  %747 = vmatprep.subr.bf16.mxu0 %v600
  %748 = vmatpush1.bf16.msra.mxu0 %v599
  %749 = vmatprep.subr.bf16.mxu0 %v603
  %750 = vmatpush1.bf16.msra.mxu0 %v602
  %751 = vmatprep.subr.bf16.mxu0 %v606
  %752 = vmatpush1.bf16.msra.mxu0 %v605
  %753 = vmatprep.subr.bf16.mxu0 %v609
  %754 = vmatpush1.bf16.msra.mxu0 %v608
  %755 = vmatprep.subr.bf16.mxu0 %v612
  %756 = vmatpush1.bf16.msra.mxu0 %v611
  %757 = vmatprep.subr.bf16.mxu0 %v615
  %758 = vmatpush1.bf16.msra.mxu0 %v614
  %759 = vmatprep.subr.bf16.mxu0 %v618
  %760 = vmatpush1.bf16.msra.mxu0 %v617
  %761 = vmatprep.subr.bf16.mxu0 %v621
  %762 = vmatpush1.bf16.msra.mxu0 %v620
  %763 = vmatprep.subr.bf16.mxu0 %v624
  %764 = vmatpush1.bf16.msra.mxu0 %v623
  %765 = vmatprep.subr.bf16.mxu0 %v627
  %766 = vmatpush1.bf16.msra.mxu0 %v626
  %767 = vmatprep.mubr.bf16.mxu0 %v312
  %768 = vmatmul.mubr.bf16.gmra.mrb[0].mxu0 %v311
  %v769 = vpop.f32.mrb[0].mxu0
  %v770 = vadd.f32 %v319, %v769
  %v771 = vpop.f32.mrb[0].mxu0
  %v772 = vadd.f32 %v323, %v771
  %v773 = vpop.f32.mrb[0].mxu0
  %v774 = vpop.f32.mrb[0].mxu0
  %775 = vdwg.mxu0
  %776 = vmatprep.subr.bf16.mxu0 %v630
  %777 = vmatpush1.bf16.msra.mxu0 %v629
  %778 = vmatprep.subr.bf16.mxu0 %v633
  %779 = vmatpush1.bf16.msra.mxu0 %v632
  %780 = vmatprep.subr.bf16.mxu0 %v636
  %781 = vmatpush1.bf16.msra.mxu0 %v635
  %782 = vmatprep.subr.bf16.mxu0 %v639
  %783 = vmatpush1.bf16.msra.mxu0 %v638
  %784 = vmatprep.subr.bf16.mxu0 %v642
  %785 = vmatpush1.bf16.msra.mxu0 %v641
  %786 = vmatprep.subr.bf16.mxu0 %v645
  %787 = vmatpush1.bf16.msra.mxu0 %v644
  %788 = vmatprep.subr.bf16.mxu0 %v648
  %789 = vmatpush1.bf16.msra.mxu0 %v647
  %790 = vmatprep.subr.bf16.mxu0 %v651
  %791 = vmatpush1.bf16.msra.mxu0 %v650
  %792 = vmatprep.subr.bf16.mxu0 %v654
  %793 = vmatpush1.bf16.msra.mxu0 %v653
  %794 = vmatprep.subr.bf16.mxu0 0
  %795 = vmatpush1.bf16.msra.mxu0 0
  %796 = vmatprep.subr.bf16.mxu0 0
  %797 = vmatpush1.bf16.msra.mxu0 0
  %798 = vmatprep.subr.bf16.mxu0 0
  %799 = vmatpush1.bf16.msra.mxu0 0
  %800 = vmatprep.subr.bf16.mxu0 0
  %801 = vmatpush1.bf16.msra.mxu0 0
  %802 = vmatprep.subr.bf16.mxu0 0
  %803 = vmatpush1.bf16.msra.mxu0 0
  %804 = vmatprep.subr.bf16.mxu0 0
  %805 = vmatpush1.bf16.msra.mxu0 0
  %806 = vmatprep.subr.bf16.mxu0 0
  %807 = vmatpush1.bf16.msra.mxu0 0
  %808 = vmatprep.mubr.bf16.mxu0 %v733
  %809 = vmatmul.mubr.bf16.gmra.mrb[0].mxu0 %v313
  %v810 = vpop.f32.mrb[0].mxu0
  %v811 = vadd.f32 %v770, %v810
  %v812 = vpop.f32.mrb[0].mxu0
  %v813 = vadd.f32 %v772, %v812
  %v814 = vpop.f32.mrb[0].mxu0
  %v815 = vpop.f32.mrb[0].mxu0
  %816 = vdwg.mxu0
  %817 = vmatprep.subr.bf16.mxu0 0
  %818 = vmatpush1.bf16.msra.mxu0 %v583
  %819 = vmatprep.subr.bf16.mxu0 0
  %820 = vmatpush1.bf16.msra.mxu0 %v586
  %821 = vmatprep.subr.bf16.mxu0 0
  %822 = vmatpush1.bf16.msra.mxu0 %v589
  %823 = vmatprep.subr.bf16.mxu0 0
  %824 = vmatpush1.bf16.msra.mxu0 %v592
  %825 = vmatprep.subr.bf16.mxu0 0
  %826 = vmatpush1.bf16.msra.mxu0 %v595
  %827 = vmatprep.subr.bf16.mxu0 0
  %828 = vmatpush1.bf16.msra.mxu0 %v598
  %829 = vmatprep.subr.bf16.mxu0 0
  %830 = vmatpush1.bf16.msra.mxu0 %v601
  %831 = vmatprep.subr.bf16.mxu0 0
  %832 = vmatpush1.bf16.msra.mxu0 %v604
  %833 = vmatprep.subr.bf16.mxu0 0
  %834 = vmatpush1.bf16.msra.mxu0 %v607
  %835 = vmatprep.subr.bf16.mxu0 0
  %836 = vmatpush1.bf16.msra.mxu0 %v610
  %837 = vmatprep.subr.bf16.mxu0 0
  %838 = vmatpush1.bf16.msra.mxu0 %v613
  %839 = vmatprep.subr.bf16.mxu0 0
  %840 = vmatpush1.bf16.msra.mxu0 %v616
  %841 = vmatprep.subr.bf16.mxu0 0
  %842 = vmatpush1.bf16.msra.mxu0 %v619
  %843 = vmatprep.subr.bf16.mxu0 0
  %844 = vmatpush1.bf16.msra.mxu0 %v622
  %845 = vmatprep.subr.bf16.mxu0 0
  %846 = vmatpush1.bf16.msra.mxu0 %v625
  %847 = vmatprep.subr.bf16.mxu0 0
  %848 = vmatpush1.bf16.msra.mxu0 %v628
  %849 = vmatprep.mubr.bf16.mxu0 %v312
  %850 = vmatmul.mubr.bf16.gmra.mrb[0].mxu0 %v311
  %v851 = vpop.f32.mrb[0].mxu0
  %v852 = vadd.f32 %v327, %v851
  %v853 = vpop.f32.mrb[0].mxu0
  %v854 = vpop.f32.mrb[0].mxu0
  %v855 = vpop.f32.mrb[0].mxu0
  %856 = vdwg.mxu0
  %857 = vmatprep.subr.bf16.mxu0 0
  %858 = vmatpush1.bf16.msra.mxu0 %v631
  %859 = vmatprep.subr.bf16.mxu0 0
  %860 = vmatpush1.bf16.msra.mxu0 %v634
  %861 = vmatprep.subr.bf16.mxu0 0
  %862 = vmatpush1.bf16.msra.mxu0 %v637
  %863 = vmatprep.subr.bf16.mxu0 0
  %864 = vmatpush1.bf16.msra.mxu0 %v640
  %865 = vmatprep.subr.bf16.mxu0 0
  %866 = vmatpush1.bf16.msra.mxu0 %v643
  %867 = vmatprep.subr.bf16.mxu0 0
  %868 = vmatpush1.bf16.msra.mxu0 %v646
  %869 = vmatprep.subr.bf16.mxu0 0
  %870 = vmatpush1.bf16.msra.mxu0 %v649
  %871 = vmatprep.subr.bf16.mxu0 0
  %872 = vmatpush1.bf16.msra.mxu0 %v652
  %873 = vmatprep.subr.bf16.mxu0 0
  %874 = vmatpush1.bf16.msra.mxu0 %v655
  %875 = vmatprep.subr.bf16.mxu0 0
  %876 = vmatpush1.bf16.msra.mxu0 0
  %877 = vmatprep.subr.bf16.mxu0 0
  %878 = vmatpush1.bf16.msra.mxu0 0
  %879 = vmatprep.subr.bf16.mxu0 0
  %880 = vmatpush1.bf16.msra.mxu0 0
  %881 = vmatprep.subr.bf16.mxu0 0
  %882 = vmatpush1.bf16.msra.mxu0 0
  %883 = vmatprep.subr.bf16.mxu0 0
  %884 = vmatpush1.bf16.msra.mxu0 0
  %885 = vmatprep.subr.bf16.mxu0 0
  %886 = vmatpush1.bf16.msra.mxu0 0
  %887 = vmatprep.subr.bf16.mxu0 0
  %888 = vmatpush1.bf16.msra.mxu0 0
  %889 = vmatprep.mubr.bf16.mxu0 %v733
  %890 = vmatmul.mubr.bf16.gmra.mrb[0].mxu0 %v313
  %v891 = vpop.f32.mrb[0].mxu0
  %v892 = vadd.f32 %v852, %v891
  %v893 = vpop.f32.mrb[0].mxu0
  %v894 = vpop.f32.mrb[0].mxu0
  %v895 = vpop.f32.mrb[0].mxu0
  %896 = vdwg.mxu0
  %v897 = vmul.f32 %v811, 0.01
  %v898 = vmul.f32 %v813, 0.01
  %v899 = vmul.f32 %v892, 0.01
  %v900 = vmax.f32 %v811, %v897
  %v901 = vmax.f32 %v813, %v898
  %v902 = vmax.f32 %v892, %v899
  %v903 = vsel %vm206, %v900, 0.0
  %v904 = vrot.slane %v903, 4
  %v905 = vadd.f32 %v903, %v904
  %v906 = vrot.slane %v905, 2
  %v907 = vadd.f32 %v905, %v906
  %v908 = vrot.slane %v907, 1
  %v909 = vadd.f32 %v907, %v908
  %v910 = vsel %vm206, %v901, 0.0
  %v911 = vrot.slane %v910, 4
  %v912 = vadd.f32 %v910, %v911
  %v913 = vrot.slane %v912, 2
  %v914 = vadd.f32 %v912, %v913
  %v915 = vrot.slane %v914, 1
  %v916 = vadd.f32 %v914, %v915
  %vm917 = vcmask 353280
  %v918 = vsel %vm917, %v902, 0.0
  %v919 = vrot.slane %v918, 4
  %v920 = vadd.f32 %v918, %v919
  %v921 = vrot.slane %v920, 2
  %v922 = vadd.f32 %v920, %v921
  %v923 = vrot.slane %v922, 1
  %v924 = vadd.f32 %v922, %v923
  %v925 = vmul.f32 %v909, 0.5
  %v926 = vmul.f32 %v916, 0.5
  %v927 = vmul.f32 %v924, 0.5
  %v928 = vmul.f32 %v900, %v900
  %v929 = vmul.f32 %v901, %v901
  %v930 = vmul.f32 %v902, %v902
  %v931 = vsel %vm206, %v928, 0.0
  %v932 = vrot.slane %v931, 4
  %v933 = vadd.f32 %v931, %v932
  %v934 = vrot.slane %v933, 2
  %v935 = vadd.f32 %v933, %v934
  %v936 = vrot.slane %v935, 1
  %v937 = vadd.f32 %v935, %v936
  %v938 = vsel %vm206, %v929, 0.0
  %v939 = vrot.slane %v938, 4
  %v940 = vadd.f32 %v938, %v939
  %v941 = vrot.slane %v940, 2
  %v942 = vadd.f32 %v940, %v941
  %v943 = vrot.slane %v942, 1
  %v944 = vadd.f32 %v942, %v943
  %v945 = vsel %vm917, %v930, 0.0
  %v946 = vrot.slane %v945, 4
  %v947 = vadd.f32 %v945, %v946
  %v948 = vrot.slane %v947, 2
  %v949 = vadd.f32 %v947, %v948
  %v950 = vrot.slane %v949, 1
  %v951 = vadd.f32 %v949, %v950
  %v952 = vmul.f32 %v937, 0.5
  %v953 = vmul.f32 %v944, 0.5
  %v954 = vmul.f32 %v951, 0.5
  %v955 = vmul.f32 %v925, %v925
  %v956 = vmul.f32 %v926, %v926
  %v957 = vmul.f32 %v927, %v927
  %v958 = vsub.f32 %v952, %v955
  %v959 = vsub.f32 %v953, %v956
  %v960 = vsub.f32 %v954, %v957
  %v961 = vld [vmem:[%s5] sm:$0x7]
  %v962 = vadd.f32 %v958, 1e-05
  %v963 = vadd.f32 %v959, 1e-05
  %v964 = vadd.f32 %v960, 1e-05
  %v965 = vrsqrt.pop %v962
  %v966 = vrsqrt.pop %v963
  %v967 = vrsqrt.pop %v964
  %v971 = vcombine.low %v965, %v966
  %v973 = vunpack.c.l.s4 1966171168
  %v974 = vunpack.c.0.s8 %v973
  %v975 = vlaneseq
  %v976 = vshrl.u32 %v975, 7
  %v977 = vsub.s32 %v974, %v976
  %v978 = vrot.slane %v971, %v977
  %v980 = vunpack.c.l.s4 1966171168
  %v981 = vunpack.c.0.s8 %v980
  %v982 = vlaneseq
  %v983 = vshrl.u32 %v982, 7
  %v984 = vsub.s32 %v981, %v983
  %v985 = vrot.slane %v967, %v984
  %v986 = vcombine.low %v978, %v985
  %v988 = vunpack.c.l.s4 1966171168
  %v989 = vunpack.c.0.s8 %v988
  %v990 = vlaneseq
  %v991 = vshrl.u32 %v990, 7
  %v992 = vsub.s32 %v989, %v991
  %v993 = vrot.slane %v986, %v992
  %v995 = vmul.f32 %v961, %v993
  %v996 = vld [vmem:[%s6] sm:$0x7]
  %v998 = vlaneseq
  %v999 = vshrl.u32 %v998, 7
  %v1000 = vsub.s32 0, %v999
  %v1001 = vrot.slane %v995, %v1000
  %v1002 = vlaneseq
  %v1003 = vshrl.u32 %v1002, 7
  %v1004 = vsub.s32 1, %v1003
  %v1005 = vrot.slane %v995, %v1004
  %v1006 = vlaneseq
  %v1007 = vshrl.u32 %v1006, 7
  %v1008 = vsub.s32 2, %v1007
  %v1009 = vrot.slane %v995, %v1008
  %v1013 = vmul.f32 %v925, %v1001
  %v1014 = vmul.f32 %v926, %v1005
  %v1015 = vmul.f32 %v927, %v1009
  %v1019 = vcombine.low %v1013, %v1014
  %v1021 = vunpack.c.l.s4 1966171168
  %v1022 = vunpack.c.0.s8 %v1021
  %v1023 = vlaneseq
  %v1024 = vshrl.u32 %v1023, 7
  %v1025 = vsub.s32 %v1022, %v1024
  %v1026 = vrot.slane %v1019, %v1025
  %v1028 = vunpack.c.l.s4 1966171168
  %v1029 = vunpack.c.0.s8 %v1028
  %v1030 = vlaneseq
  %v1031 = vshrl.u32 %v1030, 7
  %v1032 = vsub.s32 %v1029, %v1031
  %v1033 = vrot.slane %v1015, %v1032
  %v1034 = vcombine.low %v1026, %v1033
  %v1036 = vunpack.c.l.s4 1966171168
  %v1037 = vunpack.c.0.s8 %v1036
  %v1038 = vlaneseq
  %v1039 = vshrl.u32 %v1038, 7
  %v1040 = vsub.s32 %v1037, %v1039
  %v1041 = vrot.slane %v1034, %v1040
  %v1043 = vsub.f32 %v996, %v1041
  %v1044 = vld [vmem:[%s7] sm:$0xff]
  %v1045 = vld [vmem:[%s7 + $0x8] sm:$0xff]
  %v1046 = vld [vmem:[%s7 + $0x10] sm:$0xff]
  %v1047 = vld [vmem:[%s7 + $0x18] sm:$0xff]
  %v1048 = vld [vmem:[%s7 + $0x20] sm:$0xff]
  %v1049 = vld [vmem:[%s7 + $0x28] sm:$0xff]
  %v1050 = vld [vmem:[%s7 + $0x30] sm:$0xff]
  %v1051 = vld [vmem:[%s7 + $0x38] sm:$0xff]
  %v1052 = vld [vmem:[%s7 + $0x40] sm:$0xff]
  %v1053 = vld [vmem:[%s7 + $0x48] sm:$0xff]
  %v1054 = vld [vmem:[%s7 + $0x50] sm:$0xff]
  %v1055 = vld [vmem:[%s7 + $0x58] sm:$0xff]
  %v1056 = vld [vmem:[%s7 + $0x60] sm:$0xff]
  %v1057 = vld [vmem:[%s7 + $0x68] sm:$0xff]
  %v1058 = vld [vmem:[%s7 + $0x70] sm:$0xff]
  %v1059 = vld [vmem:[%s7 + $0x78] sm:$0xff]
  %v1060 = vld [vmem:[%s7 + $0x80] sm:$0xff]
  %v1061 = vld [vmem:[%s7 + $0x88] sm:$0xff]
  %v1062 = vld [vmem:[%s7 + $0x90] sm:$0xff]
  %v1063 = vld [vmem:[%s7 + $0x98] sm:$0xff]
  %v1064 = vld [vmem:[%s7 + $0xa0] sm:$0xff]
  %v1065 = vld [vmem:[%s7 + $0xa8] sm:$0xff]
  %v1066 = vld [vmem:[%s7 + $0xb0] sm:$0xff]
  %v1067 = vld [vmem:[%s7 + $0xb8] sm:$0xff]
  %v1068 = vld [vmem:[%s7 + $0xc0] sm:$0xff]
  %v1069 = vld [vmem:[%s7 + $0xc8] sm:$0xff]
  %v1070 = vld [vmem:[%s7 + $0xd0] sm:$0xff]
  %v1071 = vld [vmem:[%s7 + $0xd8] sm:$0xff]
  %v1072 = vld [vmem:[%s7 + $0xe0] sm:$0xff]
  %v1073 = vld [vmem:[%s7 + $0xe8] sm:$0xff]
  %v1074 = vld [vmem:[%s7 + $0xf0] sm:$0xff]
  %v1075 = vld [vmem:[%s7 + $0xf8] sm:$0xff]
  %v1076 = vld [vmem:[%s7 + $0x100] sm:$0xff]
  %v1077 = vld [vmem:[%s7 + $0x108] sm:$0xff]
  %v1078 = vld [vmem:[%s7 + $0x110] sm:$0xff]
  %v1079 = vld [vmem:[%s7 + $0x118] sm:$0xff]
  %v1080 = vld [vmem:[%s7 + $0x120] sm:$0xff]
  %v1081 = vld [vmem:[%s7 + $0x128] sm:$0x33]
  %v1082 = vld [vmem:[%s8] sm:$0x3]
  %v1083 = vld [vmem:[%s9] sm:$0x3]
  %v1084 = vld [vmem:[#allocation2] sm:$0x1]
  %v1085 = vmul.f32 %v900, %v1001
  %v1086 = vmul.f32 %v901, %v1005
  %v1087 = vmul.f32 %v902, %v1009
  %v1089 = vlaneseq
  %v1090 = vshrl.u32 %v1089, 7
  %v1091 = vsub.s32 0, %v1090
  %v1092 = vrot.slane %v1043, %v1091
  %v1093 = vlaneseq
  %v1094 = vshrl.u32 %v1093, 7
  %v1095 = vsub.s32 1, %v1094
  %v1096 = vrot.slane %v1043, %v1095
  %v1097 = vlaneseq
  %v1098 = vshrl.u32 %v1097, 7
  %v1099 = vsub.s32 2, %v1098
  %v1100 = vrot.slane %v1043, %v1099
  %v1104 = vadd.f32 %v1085, %v1092
  %v1105 = vadd.f32 %v1086, %v1096
  %v1106 = vadd.f32 %v1087, %v1100
  %v1107 = vpack.c.bf16 %v1104, %v1104
  %v1108 = vpack.c.bf16 %v1105, %v1105
  %v1109 = vpack.c.bf16 %v1106, %v1106
  %v1111 = vlaneseq
  %v1112 = vshrl.u32 %v1111, 7
  %v1113 = vsub.s32 0, %v1112
  %v1114 = vrot.slane %v1082, %v1113
  %v1115 = vlaneseq
  %v1116 = vshrl.u32 %v1115, 7
  %v1117 = vsub.s32 1, %v1116
  %v1118 = vrot.slane %v1082, %v1117
  %v1159 = vunpack.c.l.b16 %v1044
  %v1160 = vunpack.c.h.b16 %v1044
  %v1161 = vunpack.c.l.b16 %v1045
  %v1162 = vunpack.c.h.b16 %v1045
  %v1163 = vunpack.c.l.b16 %v1046
  %v1164 = vunpack.c.h.b16 %v1046
  %v1165 = vunpack.c.l.b16 %v1047
  %v1166 = vunpack.c.h.b16 %v1047
  %v1167 = vunpack.c.l.b16 %v1048
  %v1168 = vunpack.c.h.b16 %v1048
  %v1169 = vunpack.c.l.b16 %v1049
  %v1170 = vunpack.c.h.b16 %v1049
  %v1171 = vunpack.c.l.b16 %v1050
  %v1172 = vunpack.c.h.b16 %v1050
  %v1173 = vunpack.c.l.b16 %v1051
  %v1174 = vunpack.c.h.b16 %v1051
  %v1175 = vunpack.c.l.b16 %v1052
  %v1176 = vunpack.c.h.b16 %v1052
  %v1177 = vunpack.c.l.b16 %v1053
  %v1178 = vunpack.c.h.b16 %v1053
  %v1179 = vunpack.c.l.b16 %v1054
  %v1180 = vunpack.c.h.b16 %v1054
  %v1181 = vunpack.c.l.b16 %v1055
  %v1182 = vunpack.c.h.b16 %v1055
  %v1183 = vunpack.c.l.b16 %v1056
  %v1184 = vunpack.c.h.b16 %v1056
  %v1185 = vunpack.c.l.b16 %v1057
  %v1186 = vunpack.c.h.b16 %v1057
  %v1187 = vunpack.c.l.b16 %v1058
  %v1188 = vunpack.c.h.b16 %v1058
  %v1189 = vunpack.c.l.b16 %v1059
  %v1190 = vunpack.c.h.b16 %v1059
  %v1191 = vunpack.c.l.b16 %v1060
  %v1192 = vunpack.c.h.b16 %v1060
  %v1193 = vunpack.c.l.b16 %v1061
  %v1194 = vunpack.c.h.b16 %v1061
  %v1195 = vunpack.c.l.b16 %v1062
  %v1196 = vunpack.c.h.b16 %v1062
  %v1197 = vunpack.c.l.b16 %v1063
  %v1198 = vunpack.c.h.b16 %v1063
  %v1199 = vunpack.c.l.b16 %v1064
  %v1200 = vunpack.c.h.b16 %v1064
  %v1201 = vunpack.c.l.b16 %v1065
  %v1202 = vunpack.c.h.b16 %v1065
  %v1203 = vunpack.c.l.b16 %v1066
  %v1204 = vunpack.c.h.b16 %v1066
  %v1205 = vunpack.c.l.b16 %v1067
  %v1206 = vunpack.c.h.b16 %v1067
  %v1207 = vunpack.c.l.b16 %v1068
  %v1208 = vunpack.c.h.b16 %v1068
  %v1209 = vunpack.c.l.b16 %v1069
  %v1210 = vunpack.c.h.b16 %v1069
  %v1211 = vunpack.c.l.b16 %v1070
  %v1212 = vunpack.c.h.b16 %v1070
  %v1213 = vunpack.c.l.b16 %v1071
  %v1214 = vunpack.c.h.b16 %v1071
  %v1215 = vunpack.c.l.b16 %v1072
  %v1216 = vunpack.c.h.b16 %v1072
  %v1217 = vunpack.c.l.b16 %v1073
  %v1218 = vunpack.c.h.b16 %v1073
  %v1219 = vunpack.c.l.b16 %v1074
  %v1220 = vunpack.c.h.b16 %v1074
  %v1221 = vunpack.c.l.b16 %v1075
  %v1222 = vunpack.c.h.b16 %v1075
  %v1223 = vunpack.c.l.b16 %v1076
  %v1224 = vunpack.c.h.b16 %v1076
  %v1225 = vunpack.c.l.b16 %v1077
  %v1226 = vunpack.c.h.b16 %v1077
  %v1227 = vunpack.c.l.b16 %v1078
  %v1228 = vunpack.c.h.b16 %v1078
  %v1229 = vunpack.c.l.b16 %v1079
  %v1230 = vunpack.c.h.b16 %v1079
  %v1231 = vunpack.c.l.b16 %v1080
  %v1232 = vunpack.c.h.b16 %v1080
  %v1233 = vunpack.c.l.b16 %v1081
  %v1234 = vunpack.c.h.b16 %v1081
  %v1235 = vpack.c.b16 %v1161, %v1159
  %v1236 = vpack.c.b16 %v1162, %v1160
  %v1237 = vpack.c.b16 %v1165, %v1163
  %v1238 = vpack.c.b16 %v1166, %v1164
  %v1239 = vpack.c.b16 %v1169, %v1167
  %v1240 = vpack.c.b16 %v1170, %v1168
  %v1241 = vpack.c.b16 %v1173, %v1171
  %v1242 = vpack.c.b16 %v1174, %v1172
  %v1243 = vpack.c.b16 %v1177, %v1175
  %v1244 = vpack.c.b16 %v1178, %v1176
  %v1245 = vpack.c.b16 %v1181, %v1179
  %v1246 = vpack.c.b16 %v1182, %v1180
  %v1247 = vpack.c.b16 %v1185, %v1183
  %v1248 = vpack.c.b16 %v1186, %v1184
  %v1249 = vpack.c.b16 %v1189, %v1187
  %v1250 = vpack.c.b16 %v1190, %v1188
  %v1251 = vpack.c.b16 %v1193, %v1191
  %v1252 = vpack.c.b16 %v1194, %v1192
  %v1253 = vpack.c.b16 %v1197, %v1195
  %v1254 = vpack.c.b16 %v1198, %v1196
  %v1255 = vpack.c.b16 %v1201, %v1199
  %v1256 = vpack.c.b16 %v1202, %v1200
  %v1257 = vpack.c.b16 %v1205, %v1203
  %v1258 = vpack.c.b16 %v1206, %v1204
  %v1259 = vpack.c.b16 %v1209, %v1207
  %v1260 = vpack.c.b16 %v1210, %v1208
  %v1261 = vpack.c.b16 %v1213, %v1211
  %v1262 = vpack.c.b16 %v1214, %v1212
  %v1263 = vpack.c.b16 %v1217, %v1215
  %v1264 = vpack.c.b16 %v1218, %v1216
  %v1265 = vpack.c.b16 %v1221, %v1219
  %v1266 = vpack.c.b16 %v1222, %v1220
  %v1267 = vpack.c.b16 %v1225, %v1223
  %v1268 = vpack.c.b16 %v1226, %v1224
  %v1269 = vpack.c.b16 %v1229, %v1227
  %v1270 = vpack.c.b16 %v1230, %v1228
  %v1271 = vpack.c.b16 %v1233, %v1231
  %v1272 = vpack.c.b16 %v1234, %v1232
  %vm1309 = vcmask 359424
  %v1311 = vsel %vm1309, %v1109, 0
  %vm1313 = vcmask 1045504
  %v1315 = vsel %vm1313, %v1271, 0
  %v1318 = vsel %vm1313, %v1272, 0
  %1320 = vmatprep.subr.bf16.mxu0 %v1236
  %1321 = vmatpush1.bf16.msra.mxu0 %v1235
  %1322 = vmatprep.subr.bf16.mxu0 %v1238
  %1323 = vmatpush1.bf16.msra.mxu0 %v1237
  %1324 = vmatprep.subr.bf16.mxu0 %v1240
  %1325 = vmatpush1.bf16.msra.mxu0 %v1239
  %1326 = vmatprep.subr.bf16.mxu0 %v1242
  %1327 = vmatpush1.bf16.msra.mxu0 %v1241
  %1328 = vmatprep.subr.bf16.mxu0 %v1244
  %1329 = vmatpush1.bf16.msra.mxu0 %v1243
  %1330 = vmatprep.subr.bf16.mxu0 %v1246
  %1331 = vmatpush1.bf16.msra.mxu0 %v1245
  %1332 = vmatprep.subr.bf16.mxu0 %v1248
  %1333 = vmatpush1.bf16.msra.mxu0 %v1247
  %1334 = vmatprep.subr.bf16.mxu0 %v1250
  %1335 = vmatpush1.bf16.msra.mxu0 %v1249
  %1336 = vmatprep.subr.bf16.mxu0 %v1252
  %1337 = vmatpush1.bf16.msra.mxu0 %v1251
  %1338 = vmatprep.subr.bf16.mxu0 %v1254
  %1339 = vmatpush1.bf16.msra.mxu0 %v1253
  %1340 = vmatprep.subr.bf16.mxu0 %v1256
  %1341 = vmatpush1.bf16.msra.mxu0 %v1255
  %1342 = vmatprep.subr.bf16.mxu0 %v1258
  %1343 = vmatpush1.bf16.msra.mxu0 %v1257
  %1344 = vmatprep.subr.bf16.mxu0 %v1260
  %1345 = vmatpush1.bf16.msra.mxu0 %v1259
  %1346 = vmatprep.subr.bf16.mxu0 %v1262
  %1347 = vmatpush1.bf16.msra.mxu0 %v1261
  %1348 = vmatprep.subr.bf16.mxu0 %v1264
  %1349 = vmatpush1.bf16.msra.mxu0 %v1263
  %1350 = vmatprep.subr.bf16.mxu0 %v1266
  %1351 = vmatpush1.bf16.msra.mxu0 %v1265
  %1352 = vmatprep.mubr.bf16.mxu0 %v1108
  %1353 = vmatmul.mubr.bf16.gmra.mrb[0].mxu0 %v1107
  %v1354 = vpop.f32.mrb[0].mxu0
  %v1355 = vadd.f32 %v1114, %v1354
  %v1356 = vpop.f32.mrb[0].mxu0
  %v1357 = vadd.f32 %v1118, %v1356
  %v1358 = vpop.f32.mrb[0].mxu0
  %v1359 = vpop.f32.mrb[0].mxu0
  %1360 = vdwg.mxu0
  %1361 = vmatprep.subr.bf16.mxu0 %v1268
  %1362 = vmatpush1.bf16.msra.mxu0 %v1267
  %1363 = vmatprep.subr.bf16.mxu0 %v1270
  %1364 = vmatpush1.bf16.msra.mxu0 %v1269
  %1365 = vmatprep.subr.bf16.mxu0 %v1318
  %1366 = vmatpush1.bf16.msra.mxu0 %v1315
  %1367 = vmatprep.subr.bf16.mxu0 0
  %1368 = vmatpush1.bf16.msra.mxu0 0
  %1369 = vmatprep.subr.bf16.mxu0 0
  %1370 = vmatpush1.bf16.msra.mxu0 0
  %1371 = vmatprep.subr.bf16.mxu0 0
  %1372 = vmatpush1.bf16.msra.mxu0 0
  %1373 = vmatprep.subr.bf16.mxu0 0
  %1374 = vmatpush1.bf16.msra.mxu0 0
  %1375 = vmatprep.subr.bf16.mxu0 0
  %1376 = vmatpush1.bf16.msra.mxu0 0
  %1377 = vmatprep.subr.bf16.mxu0 0
  %1378 = vmatpush1.bf16.msra.mxu0 0
  %1379 = vmatprep.subr.bf16.mxu0 0
  %1380 = vmatpush1.bf16.msra.mxu0 0
  %1381 = vmatprep.subr.bf16.mxu0 0
  %1382 = vmatpush1.bf16.msra.mxu0 0
  %1383 = vmatprep.subr.bf16.mxu0 0
  %1384 = vmatpush1.bf16.msra.mxu0 0
  %1385 = vmatprep.subr.bf16.mxu0 0
  %1386 = vmatpush1.bf16.msra.mxu0 0
  %1387 = vmatprep.subr.bf16.mxu0 0
  %1388 = vmatpush1.bf16.msra.mxu0 0
  %1389 = vmatprep.subr.bf16.mxu0 0
  %1390 = vmatpush1.bf16.msra.mxu0 0
  %1391 = vmatprep.subr.bf16.mxu0 0
  %1392 = vmatpush1.bf16.msra.mxu0 0
  %1393 = vmatprep.mubr.bf16.mxu0 0
  %1394 = vmatmul.mubr.bf16.gmra.mrb[0].mxu0 %v1311
  %v1395 = vpop.f32.mrb[0].mxu0
  %v1396 = vadd.f32 %v1355, %v1395
  %v1397 = vpop.f32.mrb[0].mxu0
  %v1398 = vadd.f32 %v1357, %v1397
  %v1399 = vpop.f32.mrb[0].mxu0
  %v1400 = vpop.f32.mrb[0].mxu0
  %1401 = vdwg.mxu0
  %v1402 = vmul.f32 %v1396, 0.01
  %v1403 = vmul.f32 %v1398, 0.01
  %v1404 = vmax.f32 %v1396, %v1402
  %v1405 = vmax.f32 %v1398, %v1403
  %v1407 = vlaneseq
  %v1408 = vshrl.u32 %v1407, 7
  %v1409 = vsub.s32 0, %v1408
  %v1410 = vrot.slane %v1083, %v1409
  %v1411 = vlaneseq
  %v1412 = vshrl.u32 %v1411, 7
  %v1413 = vsub.s32 1, %v1412
  %v1414 = vrot.slane %v1083, %v1413
  %v1417 = vmul.f32 %v1404, %v1410
  %v1418 = vmul.f32 %v1405, %v1414
  %v1419 = vsel %vm206, %v1417, 0.0
  %vm1420 = vcmask 582656
  %v1421 = vsel %vm1420, %v1418, 0.0
  %v1422 = vadd.f32 %v1419, %v1421
  %1423 = vadd.xlane.f32.xlu0 %v1422
  %v1424 = vpop.xlane.xlu0 %1423
  %v1426 = vlaneseq
  %v1427 = vshrl.u32 %v1426, 7
  %v1428 = vsub.s32 0, %v1427
  %v1429 = vrot.slane %v1084, %v1428
  %v1431 = vadd.f32 %v1424, %v1429
  %vm1432 = vcmask 1024
  %1433 = vst.msk [vmem:[%s11] sm:$0x3] %vm1432, %v1431
  // Predicated region
  $region46: #{critic_forward.1} parent=0 // pred_check
    _
  $region47: #{critic_forward.1} parent=0 // pred_check_branch
    %1435 = sbr.rel (0) target = $region49
  $region48: #{critic_forward.1} parent=0 // pred_region
    _
  $region49: #{critic_forward.1} parent=0 // pred_fallthru
    _
  // Predicated region
  $region50: #{critic_forward.1} parent=0 // pred_check
    _
  $region51: #{critic_forward.1} parent=0 // pred_check_branch
    %1437 = sbr.rel (0) target = $region53
  $region52: #{critic_forward.1} parent=0 // pred_region
    _
  $region53: #{critic_forward.1} parent=0 // pred_fallthru
    _

</llo_original>
